<compile_context>
chip_gen: v6e
topology: v6e:2x2x1
jax: 0.10.0
libtpu: 0.0.40
codegen_flags: <defaults>
</compile_context>

<pallas_src>
import functools

import jax
import jax.numpy as jnp
from jax.experimental import pallas as pl
from jax.experimental.pallas import tpu as pltpu

_VMEM_TILE_BUDGET = 20 * 1024 * 1024   # budget for the 2x (in+out) pipeline buffers
_VMEM_LIMIT_BYTES = 48 * 1024 * 1024   # scoped VMEM limit (<= 64 MiB v7x physical)
_TARGET_STEP_BYTES = 8 * 1024 * 1024   # HBM bytes (read+write) moved per grid step


def _round_up(x, m):
    return (x + m - 1) // m * m


def _shuffle_kernel(x_ref, o_ref):
    # x_ref: (nb, g, cpg, t) -> o_ref: (nb, g*cpg, t)
    # out[c] = in[c % g, c // g]  ==  (g, cpg) -> (cpg, g) transpose collapsed
    # into the channel (sublane) axis.
    # NOTE: on v5e, verify via bundle dump that this sublane relayout does not
    # lower to per-sublane copy loops; on v6e/v7x it hides under the DMA.
    x = x_ref[...]
    o_ref[...] = jnp.transpose(x, (0, 2, 1, 3)).reshape(o_ref.shape)


def _shuffle_small_hw_kernel(x_ref, o_ref):
    # Small-feature-map path (HW < 128).  o_ref is the bit-identical,
    # lane-dense view (nb, cpg, g*hw) of the (nb, C, hw) output: concatenating
    # the g groups along lanes realizes the channel interleave.
    x = x_ref[...]                          # (nb, g, cpg, hw)
    g = x.shape[1]
    o_ref[...] = jnp.concatenate([x[:, k] for k in range(g)], axis=-1)


def _pick_tiles(n, c, g, cpg, hw, itemsize, *,
                vmem_budget=_VMEM_TILE_BUDGET,
                target_step_bytes=_TARGET_STEP_BYTES):
    """Choose (batch tile nb, HW lane tile t, small_hw_path flag)."""
    slm = max(8, 32 // itemsize)            # min sublane tile: 8 f32, 16 bf16, 32 i8
    small_hw = hw < 128

    in_rows = g * _round_up(cpg, slm)
    if small_hw:
        t = hw
        in_bytes = in_rows * _round_up(hw, 128) * itemsize
        out_bytes = _round_up(cpg, slm) * _round_up(g * hw, 128) * itemsize
    else:
        out_rows = _round_up(c, slm)
        per_lane = (in_rows + out_rows) * itemsize
        max_t = vmem_budget // (2 * per_lane)           # /2: double-buffered
        t = hw if hw <= max_t else max(128, (max_t // 128) * 128)
        in_bytes = in_rows * _round_up(t, 128) * itemsize
        out_bytes = out_rows * _round_up(t, 128) * itemsize

    per_img_vmem = 2 * (in_bytes + out_bytes)           # double-buffered blocks
    per_img_hbm = 2 * c * min(t, hw) * itemsize         # 1 read + 1 write

    nb = min(n,
             max(1, target_step_bytes // max(1, per_img_hbm)),
             max(1, vmem_budget // max(1, per_img_vmem)))
    nb = int(nb)

    # v7x has 2 TensorCores: guarantee >= 2 grid steps along a "parallel"
    # axis whenever the problem allows it (no-op on v5e/v6e, 1 TC).
    if nb >= n and t >= hw:
        if n >= 2:
            nb = (n + 1) // 2
        elif not small_hw and hw >= 256:
            t = max(128, _round_up(pl.cdiv(hw, 2), 128))
    return nb, t, small_hw


def channel_shuffle(x, groups=2, *, batch_tile=None, hw_tile=None):
    """Pallas implementation of ShuffleBlock.forward for NCHW input."""
    n, c, h, w = x.shape
    g = groups
    assert c % g == 0, "channels must be divisible by groups"
    cpg = c // g
    hw = h * w
    itemsize = jnp.dtype(x.dtype).itemsize

    nb, t, small_hw = _pick_tiles(n, c, g, cpg, hw, itemsize)
    if not small_hw and hw_tile is not None:            # manual override (tests)
        t = min(hw, hw_tile)
        if t < hw:
            t = max(128, (t // 128) * 128)               # keep lane-aligned tiles
    if batch_tile is not None:
        nb = max(1, min(n, batch_tile))

    x4 = x.reshape(n, g, cpg, hw)                        # zero-copy view of NCHW
    grid = (pl.cdiv(n, nb), pl.cdiv(hw, t))
    in_spec = pl.BlockSpec((nb, g, cpg, t), lambda bi, ti: (bi, 0, 0, ti))
    cost = pl.CostEstimate(flops=0, transcendentals=0,
                           bytes_accessed=2 * x.size * itemsize)
    cparams = pltpu.CompilerParams(
        dimension_semantics=("parallel", "parallel"),
        vmem_limit_bytes=_VMEM_LIMIT_BYTES)

    if small_hw:
        out = pl.pallas_call(
            _shuffle_small_hw_kernel,
            out_shape=jax.ShapeDtypeStruct((n, cpg, g * hw), x.dtype),
            grid=grid,
            in_specs=[in_spec],
            out_specs=pl.BlockSpec((nb, cpg, g * hw), lambda bi, ti: (bi, 0, ti)),
            compiler_params=cparams,
            cost_estimate=cost,
        )(x4)
    else:
        out = pl.pallas_call(
            _shuffle_kernel,
            out_shape=jax.ShapeDtypeStruct((n, c, hw), x.dtype),
            grid=grid,
            in_specs=[in_spec],
            out_specs=pl.BlockSpec((nb, c, t), lambda bi, ti: (bi, 0, ti)),
            compiler_params=cparams,
            cost_estimate=cost,
        )(x4)
    return out.reshape(n, c, h, w)


def _reference_shuffle(x, groups=2):
    # Direct transcription of the PyTorch forward.
    n, c, h, w = x.shape
    g = groups
    return (x.reshape(n, g, c // g, h, w)
             .transpose(0, 2, 1, 3, 4)
             .reshape(n, c, h, w))


if __name__ == "__main__":
    key = jax.random.PRNGKey(0)
    k1, k2, k3, k4 = jax.random.split(key, 4)

    # 1) Base shape from the module's forward: NCHW, groups=2, HW >= 128 path.
    x = jax.random.normal(k1, (2, 4, 16, 16), jnp.float32)
    y = jax.jit(functools.partial(channel_shuffle, groups=2))(x)
    jax.block_until_ready(y)
    assert y.shape == x.shape
    assert bool(jnp.array_equal(y, _reference_shuffle(x, 2)))

    # 2) Multi-tile, pipelined HW grid (forced hw_tile) with larger C.
    x2 = jax.random.normal(k2, (2, 48, 32, 32), jnp.float32)
    y2 = jax.jit(functools.partial(channel_shuffle, groups=2, hw_tile=256))(x2)
    jax.block_until_ready(y2)
    assert bool(jnp.array_equal(y2, _reference_shuffle(x2, 2)))

    # 3) Small feature map (7x7): lane-dense output view path.
    x3 = jax.random.normal(k3, (2, 8, 7, 7), jnp.float32)
    y3 = jax.jit(functools.partial(channel_shuffle, groups=2))(x3)
    jax.block_until_ready(y3)
    assert bool(jnp.array_equal(y3, _reference_shuffle(x3, 2)))

    # 4) groups=3, bf16, batch=1: exercises dtype-aware sizing and the
    #    megacore HW split (grid gets >= 2 steps along the HW axis).
    x4 = jax.random.normal(k4, (1, 6, 20, 20), jnp.bfloat16)
    y4 = jax.jit(functools.partial(channel_shuffle, groups=3))(x4)
    jax.block_until_ready(y4)
    assert bool(jnp.array_equal(y4, _reference_shuffle(x4, 3)))

    print("KERNEL_OK")
</pallas_src>

<mosaic_0001>
module attributes {stable_mosaic.version = 11 : i64} {
  func.func @_shuffle_kernel(%arg0: i32, %arg1: i32, %arg2: memref<1x2x2x256xf32, #tpu.memory_space<vmem>>, %arg3: memref<1x4x256xf32, #tpu.memory_space<vmem>>) attributes {dimension_semantics = [#tpu.dimension_semantics<parallel>, #tpu.dimension_semantics<parallel>], iteration_bounds = array<i64: 2, 1>, scalar_prefetch = 0 : i64, scratch_operands = 0 : i64, tpu.core_type = #tpu.core_type<tc>, window_params = [{transform_indices = @transform_0, window_bounds = array<i64: 1, 2, 2, 256>}, {transform_indices = @transform_1, window_bounds = array<i64: 1, 4, 256>}]} {
    %c0 = arith.constant 0 : index
    %c0_0 = arith.constant 0 : index
    %c0_1 = arith.constant 0 : index
    %c0_2 = arith.constant 0 : index
    %0 = vector.load %arg2[%c0, %c0_0, %c0_1, %c0_2] : memref<1x2x2x256xf32, #tpu.memory_space<vmem>>, vector<1x2x2x256xf32>
    %1 = tpu.transpose %0, [0, 2, 1, 3] : vector<1x2x2x256xf32> -> vector<1x2x2x256xf32>
    %2 = vector.shape_cast %1 : vector<1x2x2x256xf32> to vector<1x4x256xf32>
    %c0_3 = arith.constant 0 : index
    %c0_4 = arith.constant 0 : index
    %c0_5 = arith.constant 0 : index
    %3 = vector.load %arg3[%c0_3, %c0_4, %c0_5] : memref<1x4x256xf32, #tpu.memory_space<vmem>>, vector<1x4x256xf32>
    tpu.vector_store %arg3[%c0_3, %c0_4, %c0_5], %2 {strides = array<i32>} : memref<1x4x256xf32, #tpu.memory_space<vmem>>, vector<1x4x256xf32>,
    return
  }
  func.func @transform_0(%arg0: i32, %arg1: i32) -> (i32, i32, i32, i32) {
    %c0_i32 = arith.constant 0 : i32
    %c0_i32_0 = arith.constant 0 : i32
    %c0_i32_1 = arith.constant 0 : i32
    return %arg0, %c0_i32, %c0_i32_0, %arg1 : i32, i32, i32, i32
  }
  func.func @transform_1(%arg0: i32, %arg1: i32) -> (i32, i32, i32) {
    %c0_i32 = arith.constant 0 : i32
    %c0_i32_0 = arith.constant 0 : i32
    return %arg0, %c0_i32, %arg1 : i32, i32, i32
  }
}

</mosaic_0001>

<llo_original>
// kernel: channel_shuffle.1
$region0: #{channel_shuffle.1}
  #allocation0 [shape = 'u32[]', space=smem, size = 0x4, offset = 0x4, fixed_abs, tag = 'smem constant byte address 0x4 - core index']
  #allocation1 [shape = 'u32[144,128]{1,0:T(1,128)}', space=vmem, size = 0x12000, scoped, tag = 'internal scratch']
  %s0 = inlined_call_operand.vmem [shape: f32[2,2,2,256], index: 0, kind: input, shape index: {}]
  %s1 = inlined_call_operand.vmem [shape: f32[2,4,256], index: 1, kind: output, shape index: {}]
  %s2 = sld [smem:[#allocation0]]
  $region37: #{channel_shuffle.1} parent=0
    _
  %s4 = ssub.s32 1, %s2
  %s5 = scalar_select 0, %s4, %s2
  loop: start=0, step=1, limit=4
  $region2: #{channel_shuffle.1} parent=0 // loop_pre_header
    _
  $region3: #{channel_shuffle.1} parent=0 // loop_header
    %s7 = sphi 0, %s11
    %p8 = scmp.ge.s32.totalorder %s7, 4
    %s14 = sphi 0, %s26
    %s15 = sphi 0, %s22
    %s16 = sphi 0, %s14
    %s17 = sphi 0, %s15
    %s18 = sphi 0, %s16
    %s19 = sphi 0, %s17
    %s31 = sphi 0, %s33
    %s34 = sphi 0, %s31
    %s35 = sphi 0, %s34
    %s51 = sphi 0, %s35
    %s59 = sphi 0, %s61
    %s62 = sphi 0, %s59
    %s63 = sphi 0, %s62
    %s79 = sphi 0, %s63
  $region4: #{channel_shuffle.1} parent=0 // loop_header_branch
    %10 = sbr.rel (%p8) target = $region8
  $region5: #{channel_shuffle.1} parent=0 // loop_body
    %s12 = ssub.s32 %s7, 1
    %s13 = ssub.s32 %s7, 2
    %s20 = sadd.s32 1, %s15
    %p21 = scmp.ge.s32.totalorder %s20, 1
    %s22 = scalar_select %p21, 0, %s20
    %s23 = sadd.s32 1, %s14
    %s24 = scalar_select %p21, %s23, %s14
    %p25 = scmp.ge.s32.totalorder %s24, 2
    %s26 = scalar_select %p25, 0, %s24
    %s27 = ssub.s32 %s14, %s26
    %s28 = ssub.s32 %s15, %s22
    %s29 = sor.u32 %s27, %s28
    %p30 = scmp.eq.s32.totalorder %s29, 0
    %s32 = sadd.s32 %s31, 1
    %s33 = scalar_select %p30, %s31, %s32
    %p36 = pneg %p30
    %p37 = scmp.eq.s32.totalorder %s7, 1
    %p38 = por %p36, %p37
    %p39 = scmp.ne.s32.totalorder %s31, %s34
    %p40 = scmp.eq.s32.totalorder %s7, 0
    %p41 = por %p39, %p40
    %p42 = scmp.ne.s32.totalorder %s31, %s34
    %p43 = scmp.eq.s32.totalorder %s12, 1
    %p44 = por %p42, %p43
    %p45 = scmp.ne.s32.totalorder %s34, %s35
    %p46 = scmp.eq.s32.totalorder %s12, 0
    %p47 = por %p45, %p46
    %p48 = scmp.ne.s32.totalorder %s34, %s35
    %p49 = scmp.eq.s32.totalorder %s13, 1
    %p50 = por %p48, %p49
    %p52 = scmp.ne.s32.totalorder %s35, %s51
    %p53 = scmp.eq.s32.totalorder %s13, 0
    %p54 = por %p52, %p53
    %s55 = ssub.s32 %s14, %s26
    %s56 = ssub.s32 %s15, %s22
    %s57 = sor.u32 %s55, %s56
    %p58 = scmp.eq.s32.totalorder %s57, 0
    %s60 = sadd.s32 %s59, 1
    %s61 = scalar_select %p58, %s59, %s60
    %p64 = pneg %p58
    %p65 = scmp.eq.s32.totalorder %s7, 1
    %p66 = por %p64, %p65
    %p67 = scmp.ne.s32.totalorder %s59, %s62
    %p68 = scmp.eq.s32.totalorder %s7, 0
    %p69 = por %p67, %p68
    %p70 = scmp.ne.s32.totalorder %s59, %s62
    %p71 = scmp.eq.s32.totalorder %s12, 1
    %p72 = por %p70, %p71
    %p73 = scmp.ne.s32.totalorder %s62, %s63
    %p74 = scmp.eq.s32.totalorder %s12, 0
    %p75 = por %p73, %p74
    %p76 = scmp.ne.s32.totalorder %s62, %s63
    %p77 = scmp.eq.s32.totalorder %s13, 1
    %p78 = por %p76, %p77
    %p80 = scmp.ne.s32.totalorder %s63, %s79
    %p81 = scmp.eq.s32.totalorder %s13, 0
    %p82 = por %p80, %p81
    %p83 = scmp.le.s32.totalorder 1, %s7
    %p84 = scmp.lt.s32.totalorder %s7, 3
    %p85 = pnand %p83, %p84
    %p86 = pneg %p85
    // Predicated region
    $region9: #{channel_shuffle.1} parent=5 // pred_check
      _
    $region10: #{channel_shuffle.1} parent=5 // pred_check_branch
      %88 = sbr.rel (%p85) target = $region12
    $region11: #{channel_shuffle.1} parent=5 // pred_region
      %s89 = ssub.s32 %s7, 1
    $region12: #{channel_shuffle.1} parent=5 // pred_fallthru
      _
    %p90 = scmp.lt.s32.totalorder %s7, 2
    // Predicated region
    $region13: #{channel_shuffle.1} parent=5 // pred_check
      %p91 = pneg %p90
    $region14: #{channel_shuffle.1} parent=5 // pred_check_branch
      %93 = sbr.rel (%p91) target = $region16
    $region15: #{channel_shuffle.1} parent=5 // pred_region
      // Predicated region
      $region17: #{channel_shuffle.1} parent=15 // pred_check
        %p94 = pneg %p41
      $region18: #{channel_shuffle.1} parent=15 // pred_check_branch
        %96 = sbr.rel (%p94) target = $region20
      $region19: #{channel_shuffle.1} parent=15 // pred_region
        %s97 = smul.u32 2, %s15
        %p98 = scmp.lt.s32.totalorder %s14, 1
        %s99 = scalar_select %p98, %s14, 1
        %p100 = scmp.lt.s32.totalorder %s97, 1
        %s101 = scalar_select %p100, %s97, 1
        %s102 = smul.addr %s99, 4
        %s103 = sadd.s32 %s101, %s102
        %s104 = smul.addr %s103, 2
        %s105 = scalar_lea.vmem %s0, %s104
        %s106 = smul.u32 2, %s15
      $region20: #{channel_shuffle.1} parent=15 // pred_fallthru
        _
    $region16: #{channel_shuffle.1} parent=5 // pred_fallthru
      _
    %p107 = scmp.le.s32.totalorder 1, %s7
    %p108 = scmp.lt.s32.totalorder %s7, 3
    %p109 = pnand %p107, %p108
    %p110 = pneg %p109
    // Predicated region
    $region21: #{channel_shuffle.1} parent=5 // pred_check
      _
    $region22: #{channel_shuffle.1} parent=5 // pred_check_branch
      %112 = sbr.rel (%p109) target = $region24
    $region23: #{channel_shuffle.1} parent=5 // pred_region
      %s113 = ssub.s32 %s7, 1
      %s114 = smul.u32 2, %s17
      %p115 = scmp.lt.s32.totalorder %s16, 1
      %s116 = scalar_select %p115, %s16, 1
      %p117 = scmp.lt.s32.totalorder %s114, 1
      %s118 = scalar_select %p117, %s114, 1
      %s119 = smul.addr %s116, 4
      %s120 = sadd.s32 %s118, %s119
      %s121 = smul.addr %s120, 2
      %s122 = scalar_lea.vmem %s0, %s121
      %p123 = pneg %p47
      %p124 = pneg %p44
      %p125 = pneg %p75
      %p126 = pneg %p72
      %s127 = smul.u32 2, %s17
      %p128 = scmp.lt.s32.totalorder %s16, 1
      %s129 = scalar_select %p128, %s16, 1
      %p130 = scmp.lt.s32.totalorder %s127, 1
      %s131 = scalar_select %p130, %s127, 1
      %s132 = smul.addr %s129, 2
      %s133 = sadd.s32 %s131, %s132
      %s134 = smul.addr %s133, 4
      %s135 = scalar_lea.vmem %s1, %s134
      %s136 = smul.u32 2, %s17
      %p137 = scmp.lt.s32.totalorder %s16, 1
      %s138 = scalar_select %p137, %s16, 1
      %p139 = scmp.lt.s32.totalorder %s136, 1
      %s140 = scalar_select %p139, %s136, 1
      %s141 = smul.addr %s138, 4
      %s142 = sadd.s32 %s140, %s141
      %s143 = smul.addr %s142, 2
      %s144 = scalar_lea.vmem %s0, %s143
      %s145 = smul.u32 2, %s17
      %s146 = smul.u32 2, %s17
      %p147 = scmp.lt.s32.totalorder %s16, 1
      %s148 = scalar_select %p147, %s16, 1
      %p149 = scmp.lt.s32.totalorder %s146, 1
      %s150 = scalar_select %p149, %s146, 1
      %s151 = smul.addr %s148, 2
      %s152 = sadd.s32 %s150, %s151
      %s153 = smul.addr %s152, 4
      %s154 = scalar_lea.vmem %s1, %s153
      %s155 = smul.u32 2, %s17
      %v156 = vld [vmem:[%s144] sm:$0xf]
      %v157 = vld [vmem:[%s144 + $0x4] sm:$0xf]
      %v158 = vcombine.low %v156, %v157
      %v160 = vunpack.c.l.s4 1934713408
      %v161 = vunpack.c.0.s8 %v160
      %v162 = vlaneseq
      %v163 = vshrl.u32 %v162, 7
      %v164 = vsub.s32 %v161, %v163
      %v165 = vrot.slane %v158, %v164
      %v166 = vcombine.high %v165, 0.0
      %v169 = vcombine.low %v165, %v166
      %v171 = vunpack.c.l.s4 1983009808
      %v172 = vunpack.c.0.s8 %v171
      %v173 = vlaneseq
      %v174 = vshrl.u32 %v173, 7
      %v175 = vsub.s32 %v172, %v174
      %v176 = vrot.slane %v169, %v175
      %178 = vst [vmem:[%s154] sm:$0xff] %v176
      %s179 = smul.u32 2, %s17
      %p180 = scmp.lt.s32.totalorder %s16, 1
      %s181 = scalar_select %p180, %s16, 1
      %p182 = scmp.lt.s32.totalorder %s179, 1
      %s183 = scalar_select %p182, %s179, 1
      %s184 = smul.addr %s181, 2
      %s185 = sadd.s32 %s183, %s184
      %s186 = smul.addr %s185, 4
      %s187 = scalar_lea.vmem %s1, %s186
      // Predicated region
      $region25: #{channel_shuffle.1} parent=23 // pred_check
        %p188 = pneg %p72
      $region26: #{channel_shuffle.1} parent=23 // pred_check_branch
        %190 = sbr.rel (%p188) target = $region28
      $region27: #{channel_shuffle.1} parent=23 // pred_region
        %s191 = smul.u32 2, %s17
      $region28: #{channel_shuffle.1} parent=23 // pred_fallthru
        _
    $region24: #{channel_shuffle.1} parent=5 // pred_fallthru
      _
    %p192 = scmp.le.s32.totalorder 2, %s7
    // Predicated region
    $region29: #{channel_shuffle.1} parent=5 // pred_check
      %p193 = pneg %p192
    $region30: #{channel_shuffle.1} parent=5 // pred_check_branch
      %195 = sbr.rel (%p193) target = $region32
    $region31: #{channel_shuffle.1} parent=5 // pred_region
      %s196 = ssub.s32 %s7, 2
      // Predicated region
      $region33: #{channel_shuffle.1} parent=31 // pred_check
        %p197 = pneg %p78
      $region34: #{channel_shuffle.1} parent=31 // pred_check_branch
        %199 = sbr.rel (%p197) target = $region36
      $region35: #{channel_shuffle.1} parent=31 // pred_region
        %s200 = smul.u32 2, %s19
        %p201 = scmp.lt.s32.totalorder %s18, 1
        %s202 = scalar_select %p201, %s18, 1
        %p203 = scmp.lt.s32.totalorder %s200, 1
        %s204 = scalar_select %p203, %s200, 1
        %s205 = smul.addr %s202, 2
        %s206 = sadd.s32 %s204, %s205
        %s207 = smul.addr %s206, 4
        %s208 = scalar_lea.vmem %s1, %s207
      $region36: #{channel_shuffle.1} parent=31 // pred_fallthru
        _
    $region32: #{channel_shuffle.1} parent=5 // pred_fallthru
      _
  $region6: #{channel_shuffle.1} parent=0 // loop_footer
    %s11 = sadd.s32 1, %s7
  $region7: #{channel_shuffle.1} parent=0 // loop_footer_branch
    %6 = sbr.rel target = $region3
  $region8: #{channel_shuffle.1} parent=0 // loop_exit
    _

</llo_original>
